<compile_context>
chip_gen: v6e
topology: v6e:2x2x1
jax: 0.10.0
libtpu: 0.0.40
codegen_flags: <defaults>
</compile_context>

<pallas_src>
import math

import jax
import jax.numpy as jnp
from jax.experimental import pallas as pl
from jax.experimental.pallas import tpu as pltpu


def _round_up(x, m):
    return (x + m - 1) // m * m


def _pad2(a, rows, cols):
    """Zero-pad a 2-D array to [rows, cols]."""
    out = jnp.zeros((rows, cols), a.dtype)
    return out.at[: a.shape[0], : a.shape[1]].set(a)


# ----------------------------------------------------------------------------
# Fused kernel:
#   refs = (xT, b0, W_1, b_1, ..., W_L, b_L, gT, wgT, bg, out, dec_scratch)
#   * xT   [H0p, U_pad]    transposed accumulated encoder rows (users on lanes)
#   * W_l  [out_p, in_p]   torch-layout weights, zero-padded
#   * b_l  [out_p, 1]      biases as columns (broadcast over lanes)
#   * gT   [U_pad, Mt]     one-hot gather matrix tile (user -> target column)
#   * wgT  [Hd_p, Mt]      gathered decoder_linear rows, transposed
#   * bg   [1, Mt]         gathered decoder_linear bias
#   * out  [1, Mt]         target ratings (lane-dense row)
# ----------------------------------------------------------------------------
def make_fused_kernel(n_layers):
    def kernel(*refs):
        xT_ref, b0_ref = refs[0], refs[1]
        gT_ref = refs[2 + 2 * n_layers]
        wgT_ref = refs[3 + 2 * n_layers]
        bg_ref = refs[4 + 2 * n_layers]
        out_ref = refs[5 + 2 * n_layers]
        dec_ref = refs[6 + 2 * n_layers]          # VMEM scratch [Hd_p, U_pad]

        # Compute decodedT once (grid iterates sequentially on this axis).
        @pl.when(pl.program_id(0) == 0)
        def _():
            h = jnp.tanh(xT_ref[...] + b0_ref[...])        # tanh(x_ + enc bias)
            for l in range(n_layers):                      # Encoder + Decoder stacks
                w_ref = refs[2 + 2 * l]
                b_ref = refs[3 + 2 * l]
                h = jnp.tanh(
                    jnp.dot(w_ref[...], h, preferred_element_type=jnp.float32)
                    + b_ref[...]
                )
            dec_ref[...] = h

        # Gather decoded columns for this tile of target interactions via a
        # one-hot matmul on the MXU, then lane-dense reduce over features.
        dgT = jnp.dot(dec_ref[...], gT_ref[...],
                      preferred_element_type=jnp.float32)   # [Hd_p, Mt]
        out_ref[...] = (
            jnp.sum(dgT * wgT_ref[...], axis=0, keepdims=True) + bg_ref[...]
        )

    return kernel


def ae_fused(x_acc, enc_bias, layers, t_rows, dec_w_g, dec_b_g, *, lane_tile=512):
    """Fused MLP + target-rating.

    x_acc   : [U, H0]  accumulated rating-scaled encoder weight rows.
    enc_bias: [H0]
    layers  : list of (W [out, in], b [out])  (torch layout, Encoder+Decoder)
    t_rows  : [M] int32 row index into the user axis for each target interaction
    dec_w_g : [M, Hd]  decoder_linear.weight[target_item]
    dec_b_g : [M]      decoder_linear.bias[target_item]
    returns : [M] predicted ratings (fp32)
    """
    U, H0 = x_acc.shape
    M = int(t_rows.shape[0])

    U_pad = _round_up(max(U, 1), 128)                 # users -> lanes of MLP stage
    H0p = _round_up(H0, 128)
    Mt = min(lane_tile, _round_up(max(M, 1), 128))    # targets -> lanes of output
    M_pad = _round_up(max(M, 1), Mt)

    # --- padded, transposed operands ---------------------------------------
    xT = _pad2(x_acc.T.astype(jnp.float32), H0p, U_pad)            # [H0p, U_pad]
    b0 = _pad2(enc_bias.reshape(-1, 1).astype(jnp.float32), H0p, 1)

    w_list, b_list = [], []
    in_p = H0p
    for (w, b) in layers:                              # w: [out, in]
        out_p = _round_up(w.shape[0], 128)
        w_list.append(_pad2(w.astype(jnp.float32), out_p, in_p))
        b_list.append(_pad2(b.reshape(-1, 1).astype(jnp.float32), out_p, 1))
        in_p = out_p
    Hd_p = in_p                                        # padded decoded feature dim

    # one-hot gather matrix: gT[u, m] = 1 iff t_rows[m] == u (padded cols -> 0)
    t_rows_p = jnp.full((M_pad,), -1, jnp.int32).at[:M].set(t_rows.astype(jnp.int32))
    gT = (jnp.arange(U_pad, dtype=jnp.int32)[:, None] == t_rows_p[None, :]
          ).astype(jnp.float32)                        # [U_pad, M_pad]

    wgT = _pad2(dec_w_g.T.astype(jnp.float32), Hd_p, M_pad)         # [Hd_p, M_pad]
    bg = jnp.zeros((1, M_pad), jnp.float32).at[0, :M].set(dec_b_g.astype(jnp.float32))

    n_layers = len(layers)
    args = [xT, b0]
    in_specs = [
        pl.BlockSpec((H0p, U_pad), lambda j: (0, 0)),
        pl.BlockSpec((H0p, 1), lambda j: (0, 0)),
    ]
    for w, b in zip(w_list, b_list):
        args += [w, b]
        in_specs += [
            pl.BlockSpec(w.shape, lambda j: (0, 0)),
            pl.BlockSpec(b.shape, lambda j: (0, 0)),
        ]
    args += [gT, wgT, bg]
    in_specs += [
        pl.BlockSpec((U_pad, Mt), lambda j: (0, j)),
        pl.BlockSpec((Hd_p, Mt), lambda j: (0, j)),
        pl.BlockSpec((1, Mt), lambda j: (0, j)),
    ]

    # VMEM budget: all blocks worst-case double-buffered + decoded scratch,
    # 2x headroom, clamped to stay under v7x's 64 MiB physical VMEM.
    tiled_elems = U_pad * Mt + Hd_p * Mt + Mt + Mt
    const_elems = (H0p * U_pad + H0p
                   + sum(int(w.size) for w in w_list)
                   + sum(int(b.size) for b in b_list))
    vmem_bytes = 4 * (2 * (tiled_elems + const_elems) + Hd_p * U_pad)
    vmem_limit = int(min(max(2 * vmem_bytes, 32 * 1024 * 1024), 56 * 1024 * 1024))

    out = pl.pallas_call(
        make_fused_kernel(n_layers),
        out_shape=jax.ShapeDtypeStruct((1, M_pad), jnp.float32),
        grid=(M_pad // Mt,),
        in_specs=in_specs,
        out_specs=pl.BlockSpec((1, Mt), lambda j: (0, j)),
        scratch_shapes=[pltpu.VMEM((Hd_p, U_pad), jnp.float32)],
        compiler_params=pltpu.CompilerParams(
            # decoded scratch is produced at step 0 and reused -> sequential axis
            dimension_semantics=("arbitrary",),
            vmem_limit_bytes=vmem_limit,
        ),
    )(*args)
    return out[0, :M]


# ----------------------------------------------------------------------------
# Parameter init (xavier_uniform weights, zero biases), deterministic.
# ----------------------------------------------------------------------------
def xavier_uniform(key, out_f, in_f):
    bound = math.sqrt(6.0 / (in_f + out_f))
    return jax.random.uniform(key, (out_f, in_f), jnp.float32, -bound, bound)


def init_params(key, num_items, enc_hidden, dec_hidden):
    keys = jax.random.split(key, 16)
    k = 0
    params = {}
    # encoder_linear: Linear(num_items, enc_hidden[0])
    params["enc_lin_w"] = xavier_uniform(keys[k], enc_hidden[0], num_items); k += 1
    params["enc_lin_b"] = jnp.zeros((enc_hidden[0],), jnp.float32)
    # Encoder(enc_hidden[0], enc_hidden[1:]): Linear+Tanh chain
    enc_layers = []
    for i in range(len(enc_hidden) - 1):
        w = xavier_uniform(keys[k], enc_hidden[i + 1], enc_hidden[i]); k += 1
        enc_layers.append((w, jnp.zeros((enc_hidden[i + 1],), jnp.float32)))
    # Decoder(dec_hidden[-1], dec_hidden[:-1]): Linear+Tanh chain + final Linear+Tanh
    dec_layers = []
    hid = dec_hidden[:-1]
    for i in range(len(hid) - 1):
        w = xavier_uniform(keys[k], hid[i + 1], hid[i]); k += 1
        dec_layers.append((w, jnp.zeros((hid[i + 1],), jnp.float32)))
    w = xavier_uniform(keys[k], dec_hidden[-1], hid[-1]); k += 1
    dec_layers.append((w, jnp.zeros((dec_hidden[-1],), jnp.float32)))
    params["enc_layers"] = enc_layers
    params["dec_layers"] = dec_layers
    # decoder_linear: Linear(dec_hidden[-1], num_items)
    params["dec_lin_w"] = xavier_uniform(keys[k], num_items, dec_hidden[-1]); k += 1
    params["dec_lin_b"] = jnp.zeros((num_items,), jnp.float32)
    return params


# ----------------------------------------------------------------------------
# Forward pass (cfg['data_mode'] == 'user').
# ----------------------------------------------------------------------------
def ae_forward(params, inputs):
    user, item, rating = inputs["user"], inputs["item"], inputs["rating"]
    target_user, target_item = inputs["target_user"], inputs["target_item"]

    # total_user = unique(cat(user, target_user)), sorted (eager, data-dependent)
    total_user = jnp.unique(jnp.concatenate([user, target_user]))
    U = int(total_user.shape[0])
    H0 = params["enc_lin_w"].shape[0]

    # encoder_linear.weight.t()[item] * rating, scatter-added per user into the
    # rows of total_user — exactly the sort/unique_consecutive/index_add dance.
    rows = jnp.searchsorted(total_user, user)
    contrib = params["enc_lin_w"].T[item] * rating[:, None]        # [N, H0]
    x_acc = jnp.zeros((U, H0), jnp.float32).at[rows].add(contrib)

    # decoded[target_mask].repeat_interleave(counts)[inverse_idx] == gather of
    # each target interaction's user row from `decoded` -> row indices:
    t_rows = jnp.searchsorted(total_user, target_user)
    w_g = params["dec_lin_w"][target_item]             # [M, Hd]
    b_g = params["dec_lin_b"][target_item]             # [M]

    # info_size is None here; dropout(p=0.5) is identity in eval mode.
    # TODO(synk): training-mode dropout (stateful RNG mask) not implemented.
    all_layers = params["enc_layers"] + params["dec_layers"]
    pred = ae_fused(x_acc, params["enc_lin_b"], all_layers, t_rows, w_g, b_g)

    output = {"target_rating": pred}
    # 'local' branch: F.mse_loss (scalar reduction, kept in glue)
    output["loss"] = jnp.mean((pred - inputs["target_rating"]) ** 2)
    return output


# Pure-JAX reference for correctness checking.
def ae_forward_ref(params, inputs):
    user, item, rating = inputs["user"], inputs["item"], inputs["rating"]
    target_user, target_item = inputs["target_user"], inputs["target_item"]
    total_user = jnp.unique(jnp.concatenate([user, target_user]))
    U = int(total_user.shape[0])
    H0 = params["enc_lin_w"].shape[0]
    rows = jnp.searchsorted(total_user, user)
    contrib = params["enc_lin_w"].T[item] * rating[:, None]
    x_acc = jnp.zeros((U, H0), jnp.float32).at[rows].add(contrib)
    h = jnp.tanh(x_acc + params["enc_lin_b"])
    for w, b in params["enc_layers"] + params["dec_layers"]:
        h = jnp.tanh(h @ w.T + b)
    t_rows = jnp.searchsorted(total_user, target_user)
    pred = (h[t_rows] * params["dec_lin_w"][target_item]).sum(-1) \
        + params["dec_lin_b"][target_item]
    return pred


if __name__ == "__main__":
    key = jax.random.PRNGKey(0)
    num_users = 6            # encoder_num_users / decoder_num_users
    num_items = 16           # encoder_num_items / decoder_num_items
    encoder_hidden_size = [64, 32]
    decoder_hidden_size = [32, 64]
    N, M = 12, 10            # observed / target interactions

    kp, ku, ki, kr, ktu, kti, ktr = jax.random.split(key, 7)
    params = init_params(kp, num_items, encoder_hidden_size, decoder_hidden_size)

    inputs = {
        "user": jax.random.randint(ku, (N,), 0, num_users, dtype=jnp.int32),
        "item": jax.random.randint(ki, (N,), 0, num_items, dtype=jnp.int32),
        "rating": jax.random.uniform(kr, (N,), jnp.float32, 0.0, 5.0),
        "target_user": jax.random.randint(ktu, (M,), 0, num_users, dtype=jnp.int32),
        "target_item": jax.random.randint(kti, (M,), 0, num_items, dtype=jnp.int32),
        "target_rating": jax.random.uniform(ktr, (M,), jnp.float32, 0.0, 5.0),
        "local": True,
    }

    out = ae_forward(params, inputs)
    jax.block_until_ready(out["target_rating"])
    jax.block_until_ready(out["loss"])

    ref = ae_forward_ref(params, inputs)
    assert jnp.allclose(out["target_rating"], ref, rtol=1e-5, atol=1e-5), (
        out["target_rating"], ref)

    print("KERNEL_OK")
</pallas_src>

<mosaic_0001>
module attributes {stable_mosaic.version = 11 : i64} {
  func.func @kernel(%arg0: i32, %arg1: memref<128x128xf32, #tpu.memory_space<vmem>>, %arg2: memref<128x1xf32, #tpu.memory_space<vmem>>, %arg3: memref<128x128xf32, #tpu.memory_space<vmem>>, %arg4: memref<128x1xf32, #tpu.memory_space<vmem>>, %arg5: memref<128x128xf32, #tpu.memory_space<vmem>>, %arg6: memref<128x1xf32, #tpu.memory_space<vmem>>, %arg7: memref<128x128xf32, #tpu.memory_space<vmem>>, %arg8: memref<128x128xf32, #tpu.memory_space<vmem>>, %arg9: memref<1x128xf32, #tpu.memory_space<vmem>>, %arg10: memref<1x128xf32, #tpu.memory_space<vmem>>, %arg11: memref<128x128xf32, #tpu.memory_space<vmem>>) attributes {dimension_semantics = [#tpu.dimension_semantics<arbitrary>], iteration_bounds = array<i64: 1>, scalar_prefetch = 0 : i64, scratch_operands = 1 : i64, tpu.core_type = #tpu.core_type<tc>, window_params = [{pipeline_mode = #tpu.pipeline_mode<synchronous>, transform_indices = @transform_0, window_bounds = array<i64: 128, 128>}, {pipeline_mode = #tpu.pipeline_mode<synchronous>, transform_indices = @transform_1, window_bounds = array<i64: 128, 1>}, {pipeline_mode = #tpu.pipeline_mode<synchronous>, transform_indices = @transform_2, window_bounds = array<i64: 128, 128>}, {pipeline_mode = #tpu.pipeline_mode<synchronous>, transform_indices = @transform_3, window_bounds = array<i64: 128, 1>}, {pipeline_mode = #tpu.pipeline_mode<synchronous>, transform_indices = @transform_4, window_bounds = array<i64: 128, 128>}, {pipeline_mode = #tpu.pipeline_mode<synchronous>, transform_indices = @transform_5, window_bounds = array<i64: 128, 1>}, {transform_indices = @transform_6, window_bounds = array<i64: 128, 128>}, {transform_indices = @transform_7, window_bounds = array<i64: 128, 128>}, {transform_indices = @transform_8, window_bounds = array<i64: 1, 128>}, {transform_indices = @transform_9, window_bounds = array<i64: 1, 128>}]} {
    %c0_i32 = arith.constant 0 : i32
    %0 = arith.cmpi eq, %arg0, %c0_i32 : i32
    %1 = arith.extui %0 : i1 to i32
    %c0_i32_0 = arith.constant 0 : i32
    %2 = arith.cmpi ne, %1, %c0_i32_0 : i32
    scf.if %2 {
      %c0_11 = arith.constant 0 : index
      %c0_12 = arith.constant 0 : index
      %13 = vector.load %arg1[%c0_11, %c0_12] : memref<128x128xf32, #tpu.memory_space<vmem>>, vector<128x128xf32>
      %c0_13 = arith.constant 0 : index
      %c0_14 = arith.constant 0 : index
      %14 = vector.load %arg2[%c0_13, %c0_14] : memref<128x1xf32, #tpu.memory_space<vmem>>, vector<128x1xf32>
      %15 = vector.broadcast %14 : vector<128x1xf32> to vector<128x128xf32>
      %16 = arith.addf %13, %15 : vector<128x128xf32>
      %17 = math.tanh %16 : vector<128x128xf32>
      %c0_15 = arith.constant 0 : index
      %c0_16 = arith.constant 0 : index
      %18 = vector.load %arg3[%c0_15, %c0_16] : memref<128x128xf32, #tpu.memory_space<vmem>>, vector<128x128xf32>
      %cst_17 = arith.constant dense<0.000000e+00> : vector<128x128xf32>
      %19 = tpu.matmul %18, %17, %cst_17 {dimension_numbers = #tpu.dot_dimension_numbers<[1], [0], [0], [1], [0, 0, 1, 1], [], []>} : vector<128x128xf32>, vector<128x128xf32>, vector<128x128xf32> -> vector<128x128xf32>
      %c0_18 = arith.constant 0 : index
      %c0_19 = arith.constant 0 : index
      %20 = vector.load %arg4[%c0_18, %c0_19] : memref<128x1xf32, #tpu.memory_space<vmem>>, vector<128x1xf32>
      %21 = vector.broadcast %20 : vector<128x1xf32> to vector<128x128xf32>
      %22 = arith.addf %19, %21 : vector<128x128xf32>
      %23 = math.tanh %22 : vector<128x128xf32>
      %c0_20 = arith.constant 0 : index
      %c0_21 = arith.constant 0 : index
      %24 = vector.load %arg5[%c0_20, %c0_21] : memref<128x128xf32, #tpu.memory_space<vmem>>, vector<128x128xf32>
      %cst_22 = arith.constant dense<0.000000e+00> : vector<128x128xf32>
      %25 = tpu.matmul %24, %23, %cst_22 {dimension_numbers = #tpu.dot_dimension_numbers<[1], [0], [0], [1], [0, 0, 1, 1], [], []>} : vector<128x128xf32>, vector<128x128xf32>, vector<128x128xf32> -> vector<128x128xf32>
      %c0_23 = arith.constant 0 : index
      %c0_24 = arith.constant 0 : index
      %26 = vector.load %arg6[%c0_23, %c0_24] : memref<128x1xf32, #tpu.memory_space<vmem>>, vector<128x1xf32>
      %27 = vector.broadcast %26 : vector<128x1xf32> to vector<128x128xf32>
      %28 = arith.addf %25, %27 : vector<128x128xf32>
      %29 = math.tanh %28 : vector<128x128xf32>
      %c0_25 = arith.constant 0 : index
      %c0_26 = arith.constant 0 : index
      %30 = vector.load %arg11[%c0_25, %c0_26] : memref<128x128xf32, #tpu.memory_space<vmem>>, vector<128x128xf32>
      tpu.vector_store %arg11[%c0_25, %c0_26], %29 {strides = array<i32>} : memref<128x128xf32, #tpu.memory_space<vmem>>, vector<128x128xf32>,
    } else {
    }
    %c0 = arith.constant 0 : index
    %c0_1 = arith.constant 0 : index
    %3 = vector.load %arg11[%c0, %c0_1] : memref<128x128xf32, #tpu.memory_space<vmem>>, vector<128x128xf32>
    %c0_2 = arith.constant 0 : index
    %c0_3 = arith.constant 0 : index
    %4 = vector.load %arg7[%c0_2, %c0_3] : memref<128x128xf32, #tpu.memory_space<vmem>>, vector<128x128xf32>
    %cst = arith.constant dense<0.000000e+00> : vector<128x128xf32>
    %5 = tpu.matmul %3, %4, %cst {dimension_numbers = #tpu.dot_dimension_numbers<[1], [0], [0], [1], [0, 0, 1, 1], [], []>} : vector<128x128xf32>, vector<128x128xf32>, vector<128x128xf32> -> vector<128x128xf32>
    %c0_4 = arith.constant 0 : index
    %c0_5 = arith.constant 0 : index
    %6 = vector.load %arg8[%c0_4, %c0_5] : memref<128x128xf32, #tpu.memory_space<vmem>>, vector<128x128xf32>
    %7 = arith.mulf %5, %6 : vector<128x128xf32>
    %cst_6 = arith.constant dense<0.000000e+00> : vector<128xf32>
    %8 = vector.multi_reduction <add>, %7, %cst_6 [0] : vector<128x128xf32> to vector<128xf32>
    %9 = vector.shape_cast %8 : vector<128xf32> to vector<1x128xf32>
    %c0_7 = arith.constant 0 : index
    %c0_8 = arith.constant 0 : index
    %10 = vector.load %arg9[%c0_7, %c0_8] : memref<1x128xf32, #tpu.memory_space<vmem>>, vector<1x128xf32>
    %11 = arith.addf %9, %10 : vector<1x128xf32>
    %c0_9 = arith.constant 0 : index
    %c0_10 = arith.constant 0 : index
    %12 = vector.load %arg10[%c0_9, %c0_10] : memref<1x128xf32, #tpu.memory_space<vmem>>, vector<1x128xf32>
    tpu.vector_store %arg10[%c0_9, %c0_10], %11 {strides = array<i32>} : memref<1x128xf32, #tpu.memory_space<vmem>>, vector<1x128xf32>,
    return
  }
  func.func @transform_0(%arg0: i32) -> (i32, i32) {
    %c0_i32 = arith.constant 0 : i32
    %c0_i32_0 = arith.constant 0 : i32
    %c0_i32_1 = arith.constant 0 : i32
    return %c0_i32, %c0_i32_0 : i32, i32
  }
  func.func @transform_1(%arg0: i32) -> (i32, i32) {
    %c0_i32 = arith.constant 0 : i32
    %c0_i32_0 = arith.constant 0 : i32
    %c0_i32_1 = arith.constant 0 : i32
    return %c0_i32, %c0_i32_0 : i32, i32
  }
  func.func @transform_2(%arg0: i32) -> (i32, i32) {
    %c0_i32 = arith.constant 0 : i32
    %c0_i32_0 = arith.constant 0 : i32
    %c0_i32_1 = arith.constant 0 : i32
    return %c0_i32, %c0_i32_0 : i32, i32
  }
  func.func @transform_3(%arg0: i32) -> (i32, i32) {
    %c0_i32 = arith.constant 0 : i32
    %c0_i32_0 = arith.constant 0 : i32
    %c0_i32_1 = arith.constant 0 : i32
    return %c0_i32, %c0_i32_0 : i32, i32
  }
  func.func @transform_4(%arg0: i32) -> (i32, i32) {
    %c0_i32 = arith.constant 0 : i32
    %c0_i32_0 = arith.constant 0 : i32
    %c0_i32_1 = arith.constant 0 : i32
    return %c0_i32, %c0_i32_0 : i32, i32
  }
  func.func @transform_5(%arg0: i32) -> (i32, i32) {
    %c0_i32 = arith.constant 0 : i32
    %c0_i32_0 = arith.constant 0 : i32
    %c0_i32_1 = arith.constant 0 : i32
    return %c0_i32, %c0_i32_0 : i32, i32
  }
  func.func @transform_6(%arg0: i32) -> (i32, i32) {
    %c0_i32 = arith.constant 0 : i32
    %c0_i32_0 = arith.constant 0 : i32
    return %c0_i32, %arg0 : i32, i32
  }
  func.func @transform_7(%arg0: i32) -> (i32, i32) {
    %c0_i32 = arith.constant 0 : i32
    %c0_i32_0 = arith.constant 0 : i32
    return %c0_i32, %arg0 : i32, i32
  }
  func.func @transform_8(%arg0: i32) -> (i32, i32) {
    %c0_i32 = arith.constant 0 : i32
    %c0_i32_0 = arith.constant 0 : i32
    return %c0_i32, %arg0 : i32, i32
  }
  func.func @transform_9(%arg0: i32) -> (i32, i32) {
    %c0_i32 = arith.constant 0 : i32
    %c0_i32_0 = arith.constant 0 : i32
    return %c0_i32, %arg0 : i32, i32
  }
}

</mosaic_0001>

<llo_original>
// kernel: tpu_custom_call.1
$region0: #{tpu_custom_call.1}
  #allocation0 [shape = 'u32[]', space=smem, size = 0x4, offset = 0x4, fixed_abs, tag = 'smem constant byte address 0x4 - core index']
  #allocation1 [shape = 'u32[144,128]{1,0:T(1,128)}', space=vmem, size = 0x12000, scoped, tag = 'internal scratch']
  #allocation2 [shape = 'f32[128,128]{1,0:T(8,128)}', space=vmem, size = 0x10000, scoped, tag = 'scratch operand']
  %s0 = inlined_call_operand.vmem [shape: f32[128,128], index: 0, kind: input, shape index: {}]
  %s1 = inlined_call_operand.vmem [shape: f32[128,1], index: 1, kind: input, shape index: {}]
  %s2 = inlined_call_operand.vmem [shape: f32[128,128], index: 2, kind: input, shape index: {}]
  %s3 = inlined_call_operand.vmem [shape: f32[128,1], index: 3, kind: input, shape index: {}]
  %s4 = inlined_call_operand.vmem [shape: f32[128,128], index: 4, kind: input, shape index: {}]
  %s5 = inlined_call_operand.vmem [shape: f32[128,1], index: 5, kind: input, shape index: {}]
  %s6 = inlined_call_operand.hbm [shape: f32[128,128], index: 6, kind: input, shape index: {}]
  %s7 = inlined_call_operand.hbm [shape: f32[128,128], index: 7, kind: input, shape index: {}]
  %s8 = inlined_call_operand.vmem [shape: f32[1,128], index: 8, kind: input, shape index: {}]
  %s9 = inlined_call_operand.hbm [shape: f32[1,128], index: 9, kind: output, shape index: {}]
  %s10 = sld [smem:[#allocation0]]
  $region58: #{tpu_custom_call.1} parent=0
    _
  %s12 = ssub.s32 1, %s10
  %s13 = scalar_select 0, %s12, %s10
  $region1: #{tpu_custom_call.1} parent=0
    #allocation3 [shape = 'u8[65536]{0}', space=vmem, size = 0x10000, scoped, tag = 'input window, operand 6, single buffered']
    #allocation4 [shape = 's32[1]{0}', space=sflag, size = 0x4, scoped, tag = 'scoped memory for tpu_custom_call.1']
    #allocation5 [shape = 's32[1]{0}', space=sflag, size = 0x4, scoped, tag = 'scoped memory for tpu_custom_call.1']
    #allocation6 [shape = 'u8[65536]{0}', space=vmem, size = 0x10000, scoped, tag = 'input window, operand 7, single buffered']
    #allocation7 [shape = 's32[1]{0}', space=sflag, size = 0x4, scoped, tag = 'scoped memory for tpu_custom_call.1']
    #allocation8 [shape = 'u8[512]{0}', space=vmem, size = 0x400, scoped, tag = 'output window, operand 0, single buffered']
    %14 = vsyncpa [#allocation4], 0
    %15 = vsyncpa [#allocation7], 0
    %16 = vsyncpa [#allocation5], 0
    // Predicated region
    $region2: #{tpu_custom_call.1} parent=1 // pred_check
      _
    $region3: #{tpu_custom_call.1} parent=1 // pred_check_branch
      %18 = sbr.rel (0) target = $region5
    $region4: #{tpu_custom_call.1} parent=1 // pred_region
      _
    $region5: #{tpu_custom_call.1} parent=1 // pred_fallthru
      _
    // Predicated region
    $region6: #{tpu_custom_call.1} parent=1 // pred_check
      _
    $region7: #{tpu_custom_call.1} parent=1 // pred_check_branch
      %20 = sbr.rel (0) target = $region9
    $region8: #{tpu_custom_call.1} parent=1 // pred_region
      _
    $region9: #{tpu_custom_call.1} parent=1 // pred_fallthru
      _
    // Predicated region
    $region10: #{tpu_custom_call.1} parent=1 // pred_check
      _
    $region11: #{tpu_custom_call.1} parent=1 // pred_check_branch
      %22 = sbr.rel (0) target = $region13
    $region12: #{tpu_custom_call.1} parent=1 // pred_region
      _
    $region13: #{tpu_custom_call.1} parent=1 // pred_fallthru
      _
    // Predicated region
    $region14: #{tpu_custom_call.1} parent=1 // pred_check
      _
    $region15: #{tpu_custom_call.1} parent=1 // pred_check_branch
      %24 = sbr.rel (0) target = $region17
    $region16: #{tpu_custom_call.1} parent=1 // pred_region
      _
    $region17: #{tpu_custom_call.1} parent=1 // pred_fallthru
      _
    // Predicated region
    $region18: #{tpu_custom_call.1} parent=1 // pred_check
      _
    $region19: #{tpu_custom_call.1} parent=1 // pred_check_branch
      %26 = sbr.rel (0) target = $region21
    $region20: #{tpu_custom_call.1} parent=1 // pred_region
      _
    $region21: #{tpu_custom_call.1} parent=1 // pred_fallthru
      _
    // Predicated region
    $region22: #{tpu_custom_call.1} parent=1 // pred_check
      _
    $region23: #{tpu_custom_call.1} parent=1 // pred_check_branch
      %28 = sbr.rel (0) target = $region25
    $region24: #{tpu_custom_call.1} parent=1 // pred_region
      _
    $region25: #{tpu_custom_call.1} parent=1 // pred_fallthru
      _
    // Predicated region
    $region26: #{tpu_custom_call.1} parent=1 // pred_check
      _
    $region27: #{tpu_custom_call.1} parent=1 // pred_check_branch
      %30 = sbr.rel (0) target = $region29
    $region28: #{tpu_custom_call.1} parent=1 // pred_region
      %s32 = ssub.s32 2048, 2048
      %33 = vsyncadd [#allocation4], %s32
      %s34 = sshll.u32 [#allocation3], 4
      %s35 = int_to_ptr.vmem [resolvable:$true] %s34
      %40 = dma.hbm_to_vmem [thread:$0]  %s6, 2048, %s35, [#allocation4], 128, 128, 8
    $region29: #{tpu_custom_call.1} parent=1 // pred_fallthru
      _
    // Predicated region
    $region30: #{tpu_custom_call.1} parent=1 // pred_check
      _
    $region31: #{tpu_custom_call.1} parent=1 // pred_check_branch
      %42 = sbr.rel (0) target = $region33
    $region32: #{tpu_custom_call.1} parent=1 // pred_region
      %s44 = ssub.s32 2048, 2048
      %45 = vsyncadd [#allocation7], %s44
      %s46 = sshll.u32 [#allocation6], 4
      %s47 = int_to_ptr.vmem [resolvable:$true] %s46
      %52 = dma.hbm_to_vmem [thread:$0]  %s7, 2048, %s47, [#allocation7], 128, 128, 8
    $region33: #{tpu_custom_call.1} parent=1 // pred_fallthru
      _
    // Predicated region
    $region34: #{tpu_custom_call.1} parent=1 // pred_check
      _
    $region35: #{tpu_custom_call.1} parent=1 // pred_check_branch
      %54 = sbr.rel (0) target = $region37
    $region36: #{tpu_custom_call.1} parent=1 // pred_region
      _
    $region37: #{tpu_custom_call.1} parent=1 // pred_fallthru
      _
    // Predicated region
    $region38: #{tpu_custom_call.1} parent=1 // pred_check
      _
    $region39: #{tpu_custom_call.1} parent=1 // pred_check_branch
      %56 = sbr.rel (0) target = $region41
    $region40: #{tpu_custom_call.1} parent=1 // pred_region
      %57 = dma.done [#allocation4], 2048
    $region41: #{tpu_custom_call.1} parent=1 // pred_fallthru
      _
    // Predicated region
    $region42: #{tpu_custom_call.1} parent=1 // pred_check
      _
    $region43: #{tpu_custom_call.1} parent=1 // pred_check_branch
      %59 = sbr.rel (0) target = $region45
    $region44: #{tpu_custom_call.1} parent=1 // pred_region
      %60 = dma.done [#allocation7], 2048
    $region45: #{tpu_custom_call.1} parent=1 // pred_fallthru
      _
    %p61 = scmp.eq.s32.totalorder 0, 0
    // Predicated region
    $region46: #{tpu_custom_call.1} parent=1 // pred_check
      %p62 = pneg %p61
    $region47: #{tpu_custom_call.1} parent=1 // pred_check_branch
      %64 = sbr.rel (%p62) target = $region49
    $region48: #{tpu_custom_call.1} parent=1 // pred_region
      %v65 = vld [vmem:[%s0] sm:$0xff]
      %v66 = vld [vmem:[%s0 + $0x8] sm:$0xff]
      %v67 = vld [vmem:[%s0 + $0x10] sm:$0xff]
      %v68 = vld [vmem:[%s0 + $0x18] sm:$0xff]
      %v69 = vld [vmem:[%s0 + $0x20] sm:$0xff]
      %v70 = vld [vmem:[%s0 + $0x28] sm:$0xff]
      %v71 = vld [vmem:[%s0 + $0x30] sm:$0xff]
      %v72 = vld [vmem:[%s0 + $0x38] sm:$0xff]
      %v73 = vld [vmem:[%s0 + $0x40] sm:$0xff]
      %v74 = vld [vmem:[%s0 + $0x48] sm:$0xff]
      %v75 = vld [vmem:[%s0 + $0x50] sm:$0xff]
      %v76 = vld [vmem:[%s0 + $0x58] sm:$0xff]
      %v77 = vld [vmem:[%s0 + $0x60] sm:$0xff]
      %v78 = vld [vmem:[%s0 + $0x68] sm:$0xff]
      %v79 = vld [vmem:[%s0 + $0x70] sm:$0xff]
      %v80 = vld [vmem:[%s0 + $0x78] sm:$0xff]
      %v81 = vld [vmem:[%s1] sm:$0xff]
      %v82 = vld [vmem:[%s1 + $0x8] sm:$0xff]
      %v83 = vld [vmem:[%s1 + $0x10] sm:$0xff]
      %v84 = vld [vmem:[%s1 + $0x18] sm:$0xff]
      %v85 = vld [vmem:[%s1 + $0x20] sm:$0xff]
      %v86 = vld [vmem:[%s1 + $0x28] sm:$0xff]
      %v87 = vld [vmem:[%s1 + $0x30] sm:$0xff]
      %v88 = vld [vmem:[%s1 + $0x38] sm:$0xff]
      %v89 = vld [vmem:[%s1 + $0x40] sm:$0xff]
      %v90 = vld [vmem:[%s1 + $0x48] sm:$0xff]
      %v91 = vld [vmem:[%s1 + $0x50] sm:$0xff]
      %v92 = vld [vmem:[%s1 + $0x58] sm:$0xff]
      %v93 = vld [vmem:[%s1 + $0x60] sm:$0xff]
      %v94 = vld [vmem:[%s1 + $0x68] sm:$0xff]
      %v95 = vld [vmem:[%s1 + $0x70] sm:$0xff]
      %v96 = vld [vmem:[%s1 + $0x78] sm:$0xff]
      %98 = vset.pattern.permute.xlu0 0
      %99 = vperm.xlu0 %98, %v81
      %v100 = vpop.permute.xlu0 %99
      %103 = vset.pattern.permute.xlu0 0
      %104 = vperm.xlu0 %103, %v82
      %v105 = vpop.permute.xlu0 %104
      %108 = vset.pattern.permute.xlu0 0
      %109 = vperm.xlu0 %108, %v83
      %v110 = vpop.permute.xlu0 %109
      %113 = vset.pattern.permute.xlu0 0
      %114 = vperm.xlu0 %113, %v84
      %v115 = vpop.permute.xlu0 %114
      %118 = vset.pattern.permute.xlu0 0
      %119 = vperm.xlu0 %118, %v85
      %v120 = vpop.permute.xlu0 %119
      %123 = vset.pattern.permute.xlu0 0
      %124 = vperm.xlu0 %123, %v86
      %v125 = vpop.permute.xlu0 %124
      %128 = vset.pattern.permute.xlu0 0
      %129 = vperm.xlu0 %128, %v87
      %v130 = vpop.permute.xlu0 %129
      %133 = vset.pattern.permute.xlu0 0
      %134 = vperm.xlu0 %133, %v88
      %v135 = vpop.permute.xlu0 %134
      %138 = vset.pattern.permute.xlu0 0
      %139 = vperm.xlu0 %138, %v89
      %v140 = vpop.permute.xlu0 %139
      %143 = vset.pattern.permute.xlu0 0
      %144 = vperm.xlu0 %143, %v90
      %v145 = vpop.permute.xlu0 %144
      %148 = vset.pattern.permute.xlu0 0
      %149 = vperm.xlu0 %148, %v91
      %v150 = vpop.permute.xlu0 %149
      %153 = vset.pattern.permute.xlu0 0
      %154 = vperm.xlu0 %153, %v92
      %v155 = vpop.permute.xlu0 %154
      %158 = vset.pattern.permute.xlu0 0
      %159 = vperm.xlu0 %158, %v93
      %v160 = vpop.permute.xlu0 %159
      %163 = vset.pattern.permute.xlu0 0
      %164 = vperm.xlu0 %163, %v94
      %v165 = vpop.permute.xlu0 %164
      %168 = vset.pattern.permute.xlu0 0
      %169 = vperm.xlu0 %168, %v95
      %v170 = vpop.permute.xlu0 %169
      %173 = vset.pattern.permute.xlu0 0
      %174 = vperm.xlu0 %173, %v96
      %v175 = vpop.permute.xlu0 %174
      %v177 = vadd.f32 %v65, %v100
      %v178 = vadd.f32 %v66, %v105
      %v179 = vadd.f32 %v67, %v110
      %v180 = vadd.f32 %v68, %v115
      %v181 = vadd.f32 %v69, %v120
      %v182 = vadd.f32 %v70, %v125
      %v183 = vadd.f32 %v71, %v130
      %v184 = vadd.f32 %v72, %v135
      %v185 = vadd.f32 %v73, %v140
      %v186 = vadd.f32 %v74, %v145
      %v187 = vadd.f32 %v75, %v150
      %v188 = vadd.f32 %v76, %v155
      %v189 = vadd.f32 %v77, %v160
      %v190 = vadd.f32 %v78, %v165
      %v191 = vadd.f32 %v79, %v170
      %v192 = vadd.f32 %v80, %v175
      %v193 = vtanh.pop %v177
      %v194 = vtanh.pop %v178
      %v195 = vtanh.pop %v179
      %v196 = vtanh.pop %v180
      %v197 = vtanh.pop %v181
      %v198 = vtanh.pop %v182
      %v199 = vtanh.pop %v183
      %v200 = vtanh.pop %v184
      %v201 = vtanh.pop %v185
      %v202 = vtanh.pop %v186
      %v203 = vtanh.pop %v187
      %v204 = vtanh.pop %v188
      %v205 = vtanh.pop %v189
      %v206 = vtanh.pop %v190
      %v207 = vtanh.pop %v191
      %v208 = vtanh.pop %v192
      %v209 = vld [vmem:[%s2] sm:$0xff]
      %v210 = vld [vmem:[%s2 + $0x8] sm:$0xff]
      %v211 = vld [vmem:[%s2 + $0x10] sm:$0xff]
      %v212 = vld [vmem:[%s2 + $0x18] sm:$0xff]
      %v213 = vld [vmem:[%s2 + $0x20] sm:$0xff]
      %v214 = vld [vmem:[%s2 + $0x28] sm:$0xff]
      %v215 = vld [vmem:[%s2 + $0x30] sm:$0xff]
      %v216 = vld [vmem:[%s2 + $0x38] sm:$0xff]
      %v217 = vld [vmem:[%s2 + $0x40] sm:$0xff]
      %v218 = vld [vmem:[%s2 + $0x48] sm:$0xff]
      %v219 = vld [vmem:[%s2 + $0x50] sm:$0xff]
      %v220 = vld [vmem:[%s2 + $0x58] sm:$0xff]
      %v221 = vld [vmem:[%s2 + $0x60] sm:$0xff]
      %v222 = vld [vmem:[%s2 + $0x68] sm:$0xff]
      %v223 = vld [vmem:[%s2 + $0x70] sm:$0xff]
      %v224 = vld [vmem:[%s2 + $0x78] sm:$0xff]
      %v225 = vld [vmem:[%s3] sm:$0xff]
      %v226 = vld [vmem:[%s3 + $0x8] sm:$0xff]
      %v227 = vld [vmem:[%s3 + $0x10] sm:$0xff]
      %v228 = vld [vmem:[%s3 + $0x18] sm:$0xff]
      %v229 = vld [vmem:[%s3 + $0x20] sm:$0xff]
      %v230 = vld [vmem:[%s3 + $0x28] sm:$0xff]
      %v231 = vld [vmem:[%s3 + $0x30] sm:$0xff]
      %v232 = vld [vmem:[%s3 + $0x38] sm:$0xff]
      %v233 = vld [vmem:[%s3 + $0x40] sm:$0xff]
      %v234 = vld [vmem:[%s3 + $0x48] sm:$0xff]
      %v235 = vld [vmem:[%s3 + $0x50] sm:$0xff]
      %v236 = vld [vmem:[%s3 + $0x58] sm:$0xff]
      %v237 = vld [vmem:[%s3 + $0x60] sm:$0xff]
      %v238 = vld [vmem:[%s3 + $0x68] sm:$0xff]
      %v239 = vld [vmem:[%s3 + $0x70] sm:$0xff]
      %v240 = vld [vmem:[%s3 + $0x78] sm:$0xff]
      %242 = vset.pattern.permute.xlu0 0
      %243 = vperm.xlu0 %242, %v225
      %v244 = vpop.permute.xlu0 %243
      %247 = vset.pattern.permute.xlu0 0
      %248 = vperm.xlu0 %247, %v226
      %v249 = vpop.permute.xlu0 %248
      %252 = vset.pattern.permute.xlu0 0
      %253 = vperm.xlu0 %252, %v227
      %v254 = vpop.permute.xlu0 %253
      %257 = vset.pattern.permute.xlu0 0
      %258 = vperm.xlu0 %257, %v228
      %v259 = vpop.permute.xlu0 %258
      %262 = vset.pattern.permute.xlu0 0
      %263 = vperm.xlu0 %262, %v229
      %v264 = vpop.permute.xlu0 %263
      %267 = vset.pattern.permute.xlu0 0
      %268 = vperm.xlu0 %267, %v230
      %v269 = vpop.permute.xlu0 %268
      %272 = vset.pattern.permute.xlu0 0
      %273 = vperm.xlu0 %272, %v231
      %v274 = vpop.permute.xlu0 %273
      %277 = vset.pattern.permute.xlu0 0
      %278 = vperm.xlu0 %277, %v232
      %v279 = vpop.permute.xlu0 %278
      %282 = vset.pattern.permute.xlu0 0
      %283 = vperm.xlu0 %282, %v233
      %v284 = vpop.permute.xlu0 %283
      %287 = vset.pattern.permute.xlu0 0
      %288 = vperm.xlu0 %287, %v234
      %v289 = vpop.permute.xlu0 %288
      %292 = vset.pattern.permute.xlu0 0
      %293 = vperm.xlu0 %292, %v235
      %v294 = vpop.permute.xlu0 %293
      %297 = vset.pattern.permute.xlu0 0
      %298 = vperm.xlu0 %297, %v236
      %v299 = vpop.permute.xlu0 %298
      %302 = vset.pattern.permute.xlu0 0
      %303 = vperm.xlu0 %302, %v237
      %v304 = vpop.permute.xlu0 %303
      %307 = vset.pattern.permute.xlu0 0
      %308 = vperm.xlu0 %307, %v238
      %v309 = vpop.permute.xlu0 %308
      %312 = vset.pattern.permute.xlu0 0
      %313 = vperm.xlu0 %312, %v239
      %v314 = vpop.permute.xlu0 %313
      %317 = vset.pattern.permute.xlu0 0
      %318 = vperm.xlu0 %317, %v240
      %v319 = vpop.permute.xlu0 %318
      %321 = vmatprep.subr.mxu0 0.0
      %322 = vmatpush1.msra.mxu0 %v208
      %323 = vmatprep.subr.mxu0 0.0
      %324 = vmatpush1.msra.mxu0 %v207
      %325 = vmatprep.subr.mxu0 0.0
      %326 = vmatpush1.msra.mxu0 %v206
      %327 = vmatprep.subr.mxu0 0.0
      %328 = vmatpush1.msra.mxu0 %v205
      %329 = vmatprep.subr.mxu0 0.0
      %330 = vmatpush1.msra.mxu0 %v204
      %331 = vmatprep.subr.mxu0 0.0
      %332 = vmatpush1.msra.mxu0 %v203
      %333 = vmatprep.subr.mxu0 0.0
      %334 = vmatpush1.msra.mxu0 %v202
      %335 = vmatprep.subr.mxu0 0.0
      %336 = vmatpush1.msra.mxu0 %v201
      %337 = vmatprep.subr.mxu0 0.0
      %338 = vmatpush1.msra.mxu0 %v200
      %339 = vmatprep.subr.mxu0 0.0
      %340 = vmatpush1.msra.mxu0 %v199
      %341 = vmatprep.subr.mxu0 0.0
      %342 = vmatpush1.msra.mxu0 %v198
      %343 = vmatprep.subr.mxu0 0.0
      %344 = vmatpush1.msra.mxu0 %v197
      %345 = vmatprep.subr.mxu0 0.0
      %346 = vmatpush1.msra.mxu0 %v196
      %347 = vmatprep.subr.mxu0 0.0
      %348 = vmatpush1.msra.mxu0 %v195
      %349 = vmatprep.subr.mxu0 0.0
      %350 = vmatpush1.msra.mxu0 %v194
      %351 = vmatprep.subr.mxu0 0.0
      %352 = vmatpush1.msra.mxu0 %v193
      %353 = vmatprep.subr.mxu0 0.0
      %354 = vmatpush2.msra.mxu0 0.0
      %355 = vmatprep.subr.mxu0 0.0
      %356 = vmatpush2.msra.mxu0 0.0
      %357 = vmatprep.subr.mxu0 0.0
      %358 = vmatpush2.msra.mxu0 0.0
      %359 = vmatprep.subr.mxu0 0.0
      %360 = vmatpush2.msra.mxu0 0.0
      %361 = vmatprep.subr.mxu0 0.0
      %362 = vmatpush2.msra.mxu0 0.0
      %363 = vmatprep.subr.mxu0 0.0
      %364 = vmatpush2.msra.mxu0 0.0
      %365 = vmatprep.subr.mxu0 0.0
      %366 = vmatpush2.msra.mxu0 0.0
      %367 = vmatprep.subr.mxu0 0.0
      %368 = vmatpush2.msra.mxu0 0.0
      %369 = vmatprep.subr.mxu0 0.0
      %370 = vmatpush2.msra.mxu0 0.0
      %371 = vmatprep.subr.mxu0 0.0
      %372 = vmatpush2.msra.mxu0 0.0
      %373 = vmatprep.subr.mxu0 0.0
      %374 = vmatpush2.msra.mxu0 0.0
      %375 = vmatprep.subr.mxu0 0.0
      %376 = vmatpush2.msra.mxu0 0.0
      %377 = vmatprep.subr.mxu0 0.0
      %378 = vmatpush2.msra.mxu0 0.0
      %379 = vmatprep.subr.mxu0 0.0
      %380 = vmatpush2.msra.mxu0 0.0
      %381 = vmatprep.subr.mxu0 0.0
      %382 = vmatpush2.msra.mxu0 0.0
      %383 = vmatprep.subr.mxu0 0.0
      %384 = vmatpush2.msra.mxu0 0.0
      %385 = vmatprep.mubr.f32.mxu0 0.0
      %386 = vmatmul.mubr.f32.gmra.mxu0 %v209
      %v387 = vpop.f32.mrf.mxu0
      %v388 = vadd.f32 %v244, %v387
      %v389 = vpop.f32.mrf.mxu0
      %390 = vmatprep.mubr.f32.mxu0 0.0
      %391 = vmatmul.mubr.f32.gmra.mxu0 %v210
      %v392 = vpop.f32.mrf.mxu0
      %v393 = vadd.f32 %v249, %v392
      %v394 = vpop.f32.mrf.mxu0
      %395 = vmatprep.mubr.f32.mxu0 0.0
      %396 = vmatmul.mubr.f32.gmra.mxu0 %v211
      %v397 = vpop.f32.mrf.mxu0
      %v398 = vadd.f32 %v254, %v397
      %v399 = vpop.f32.mrf.mxu0
      %400 = vmatprep.mubr.f32.mxu0 0.0
      %401 = vmatmul.mubr.f32.gmra.mxu0 %v212
      %v402 = vpop.f32.mrf.mxu0
      %v403 = vadd.f32 %v259, %v402
      %v404 = vpop.f32.mrf.mxu0
      %405 = vmatprep.mubr.f32.mxu0 0.0
      %406 = vmatmul.mubr.f32.gmra.mxu0 %v213
      %v407 = vpop.f32.mrf.mxu0
      %v408 = vadd.f32 %v264, %v407
      %v409 = vpop.f32.mrf.mxu0
      %410 = vmatprep.mubr.f32.mxu0 0.0
      %411 = vmatmul.mubr.f32.gmra.mxu0 %v214
      %v412 = vpop.f32.mrf.mxu0
      %v413 = vadd.f32 %v269, %v412
      %v414 = vpop.f32.mrf.mxu0
      %415 = vmatprep.mubr.f32.mxu0 0.0
      %416 = vmatmul.mubr.f32.gmra.mxu0 %v215
      %v417 = vpop.f32.mrf.mxu0
      %v418 = vadd.f32 %v274, %v417
      %v419 = vpop.f32.mrf.mxu0
      %420 = vmatprep.mubr.f32.mxu0 0.0
      %421 = vmatmul.mubr.f32.gmra.mxu0 %v216
      %v422 = vpop.f32.mrf.mxu0
      %v423 = vadd.f32 %v279, %v422
      %v424 = vpop.f32.mrf.mxu0
      %425 = vmatprep.mubr.f32.mxu0 0.0
      %426 = vmatmul.mubr.f32.gmra.mxu0 %v217
      %v427 = vpop.f32.mrf.mxu0
      %v428 = vadd.f32 %v284, %v427
      %v429 = vpop.f32.mrf.mxu0
      %430 = vmatprep.mubr.f32.mxu0 0.0
      %431 = vmatmul.mubr.f32.gmra.mxu0 %v218
      %v432 = vpop.f32.mrf.mxu0
      %v433 = vadd.f32 %v289, %v432
      %v434 = vpop.f32.mrf.mxu0
      %435 = vmatprep.mubr.f32.mxu0 0.0
      %436 = vmatmul.mubr.f32.gmra.mxu0 %v219
      %v437 = vpop.f32.mrf.mxu0
      %v438 = vadd.f32 %v294, %v437
      %v439 = vpop.f32.mrf.mxu0
      %440 = vmatprep.mubr.f32.mxu0 0.0
      %441 = vmatmul.mubr.f32.gmra.mxu0 %v220
      %v442 = vpop.f32.mrf.mxu0
      %v443 = vadd.f32 %v299, %v442
      %v444 = vpop.f32.mrf.mxu0
      %445 = vmatprep.mubr.f32.mxu0 0.0
      %446 = vmatmul.mubr.f32.gmra.mxu0 %v221
      %v447 = vpop.f32.mrf.mxu0
      %v448 = vadd.f32 %v304, %v447
      %v449 = vpop.f32.mrf.mxu0
      %450 = vmatprep.mubr.f32.mxu0 0.0
      %451 = vmatmul.mubr.f32.gmra.mxu0 %v222
      %v452 = vpop.f32.mrf.mxu0
      %v453 = vadd.f32 %v309, %v452
      %v454 = vpop.f32.mrf.mxu0
      %455 = vmatprep.mubr.f32.mxu0 0.0
      %456 = vmatmul.mubr.f32.gmra.mxu0 %v223
      %v457 = vpop.f32.mrf.mxu0
      %v458 = vadd.f32 %v314, %v457
      %v459 = vpop.f32.mrf.mxu0
      %460 = vmatprep.mubr.f32.mxu0 0.0
      %461 = vmatmul.mubr.f32.gmra.mxu0 %v224
      %v462 = vpop.f32.mrf.mxu0
      %v463 = vadd.f32 %v319, %v462
      %v464 = vpop.f32.mrf.mxu0
      %465 = vdwg.mxu0
      %v466 = vtanh.pop %v388
      %v467 = vtanh.pop %v393
      %v468 = vtanh.pop %v398
      %v469 = vtanh.pop %v403
      %v470 = vtanh.pop %v408
      %v471 = vtanh.pop %v413
      %v472 = vtanh.pop %v418
      %v473 = vtanh.pop %v423
      %v474 = vtanh.pop %v428
      %v475 = vtanh.pop %v433
      %v476 = vtanh.pop %v438
      %v477 = vtanh.pop %v443
      %v478 = vtanh.pop %v448
      %v479 = vtanh.pop %v453
      %v480 = vtanh.pop %v458
      %v481 = vtanh.pop %v463
      %v482 = vld [vmem:[%s4] sm:$0xff]
      %v483 = vld [vmem:[%s4 + $0x8] sm:$0xff]
      %v484 = vld [vmem:[%s4 + $0x10] sm:$0xff]
      %v485 = vld [vmem:[%s4 + $0x18] sm:$0xff]
      %v486 = vld [vmem:[%s4 + $0x20] sm:$0xff]
      %v487 = vld [vmem:[%s4 + $0x28] sm:$0xff]
      %v488 = vld [vmem:[%s4 + $0x30] sm:$0xff]
      %v489 = vld [vmem:[%s4 + $0x38] sm:$0xff]
      %v490 = vld [vmem:[%s4 + $0x40] sm:$0xff]
      %v491 = vld [vmem:[%s4 + $0x48] sm:$0xff]
      %v492 = vld [vmem:[%s4 + $0x50] sm:$0xff]
      %v493 = vld [vmem:[%s4 + $0x58] sm:$0xff]
      %v494 = vld [vmem:[%s4 + $0x60] sm:$0xff]
      %v495 = vld [vmem:[%s4 + $0x68] sm:$0xff]
      %v496 = vld [vmem:[%s4 + $0x70] sm:$0xff]
      %v497 = vld [vmem:[%s4 + $0x78] sm:$0xff]
      %v498 = vld [vmem:[%s5] sm:$0xff]
      %v499 = vld [vmem:[%s5 + $0x8] sm:$0xff]
      %v500 = vld [vmem:[%s5 + $0x10] sm:$0xff]
      %v501 = vld [vmem:[%s5 + $0x18] sm:$0xff]
      %v502 = vld [vmem:[%s5 + $0x20] sm:$0xff]
      %v503 = vld [vmem:[%s5 + $0x28] sm:$0xff]
      %v504 = vld [vmem:[%s5 + $0x30] sm:$0xff]
      %v505 = vld [vmem:[%s5 + $0x38] sm:$0xff]
      %v506 = vld [vmem:[%s5 + $0x40] sm:$0xff]
      %v507 = vld [vmem:[%s5 + $0x48] sm:$0xff]
      %v508 = vld [vmem:[%s5 + $0x50] sm:$0xff]
      %v509 = vld [vmem:[%s5 + $0x58] sm:$0xff]
      %v510 = vld [vmem:[%s5 + $0x60] sm:$0xff]
      %v511 = vld [vmem:[%s5 + $0x68] sm:$0xff]
      %v512 = vld [vmem:[%s5 + $0x70] sm:$0xff]
      %v513 = vld [vmem:[%s5 + $0x78] sm:$0xff]
      %515 = vset.pattern.permute.xlu0 0
      %516 = vperm.xlu0 %515, %v498
      %v517 = vpop.permute.xlu0 %516
      %520 = vset.pattern.permute.xlu0 0
      %521 = vperm.xlu0 %520, %v499
      %v522 = vpop.permute.xlu0 %521
      %525 = vset.pattern.permute.xlu0 0
      %526 = vperm.xlu0 %525, %v500
      %v527 = vpop.permute.xlu0 %526
      %530 = vset.pattern.permute.xlu0 0
      %531 = vperm.xlu0 %530, %v501
      %v532 = vpop.permute.xlu0 %531
      %535 = vset.pattern.permute.xlu0 0
      %536 = vperm.xlu0 %535, %v502
      %v537 = vpop.permute.xlu0 %536
      %540 = vset.pattern.permute.xlu0 0
      %541 = vperm.xlu0 %540, %v503
      %v542 = vpop.permute.xlu0 %541
      %545 = vset.pattern.permute.xlu0 0
      %546 = vperm.xlu0 %545, %v504
      %v547 = vpop.permute.xlu0 %546
      %550 = vset.pattern.permute.xlu0 0
      %551 = vperm.xlu0 %550, %v505
      %v552 = vpop.permute.xlu0 %551
      %555 = vset.pattern.permute.xlu0 0
      %556 = vperm.xlu0 %555, %v506
      %v557 = vpop.permute.xlu0 %556
      %560 = vset.pattern.permute.xlu0 0
      %561 = vperm.xlu0 %560, %v507
      %v562 = vpop.permute.xlu0 %561
      %565 = vset.pattern.permute.xlu0 0
      %566 = vperm.xlu0 %565, %v508
      %v567 = vpop.permute.xlu0 %566
      %570 = vset.pattern.permute.xlu0 0
      %571 = vperm.xlu0 %570, %v509
      %v572 = vpop.permute.xlu0 %571
      %575 = vset.pattern.permute.xlu0 0
      %576 = vperm.xlu0 %575, %v510
      %v577 = vpop.permute.xlu0 %576
      %580 = vset.pattern.permute.xlu0 0
      %581 = vperm.xlu0 %580, %v511
      %v582 = vpop.permute.xlu0 %581
      %585 = vset.pattern.permute.xlu0 0
      %586 = vperm.xlu0 %585, %v512
      %v587 = vpop.permute.xlu0 %586
      %590 = vset.pattern.permute.xlu0 0
      %591 = vperm.xlu0 %590, %v513
      %v592 = vpop.permute.xlu0 %591
      %594 = vmatprep.subr.mxu0 0.0
      %595 = vmatpush1.msra.mxu0 %v481
      %596 = vmatprep.subr.mxu0 0.0
      %597 = vmatpush1.msra.mxu0 %v480
      %598 = vmatprep.subr.mxu0 0.0
      %599 = vmatpush1.msra.mxu0 %v479
      %600 = vmatprep.subr.mxu0 0.0
      %601 = vmatpush1.msra.mxu0 %v478
      %602 = vmatprep.subr.mxu0 0.0
      %603 = vmatpush1.msra.mxu0 %v477
      %604 = vmatprep.subr.mxu0 0.0
      %605 = vmatpush1.msra.mxu0 %v476
      %606 = vmatprep.subr.mxu0 0.0
      %607 = vmatpush1.msra.mxu0 %v475
      %608 = vmatprep.subr.mxu0 0.0
      %609 = vmatpush1.msra.mxu0 %v474
      %610 = vmatprep.subr.mxu0 0.0
      %611 = vmatpush1.msra.mxu0 %v473
      %612 = vmatprep.subr.mxu0 0.0
      %613 = vmatpush1.msra.mxu0 %v472
      %614 = vmatprep.subr.mxu0 0.0
      %615 = vmatpush1.msra.mxu0 %v471
      %616 = vmatprep.subr.mxu0 0.0
      %617 = vmatpush1.msra.mxu0 %v470
      %618 = vmatprep.subr.mxu0 0.0
      %619 = vmatpush1.msra.mxu0 %v469
      %620 = vmatprep.subr.mxu0 0.0
      %621 = vmatpush1.msra.mxu0 %v468
      %622 = vmatprep.subr.mxu0 0.0
      %623 = vmatpush1.msra.mxu0 %v467
      %624 = vmatprep.subr.mxu0 0.0
      %625 = vmatpush1.msra.mxu0 %v466
      %626 = vmatprep.subr.mxu0 0.0
      %627 = vmatpush2.msra.mxu0 0.0
      %628 = vmatprep.subr.mxu0 0.0
      %629 = vmatpush2.msra.mxu0 0.0
      %630 = vmatprep.subr.mxu0 0.0
      %631 = vmatpush2.msra.mxu0 0.0
      %632 = vmatprep.subr.mxu0 0.0
      %633 = vmatpush2.msra.mxu0 0.0
      %634 = vmatprep.subr.mxu0 0.0
      %635 = vmatpush2.msra.mxu0 0.0
      %636 = vmatprep.subr.mxu0 0.0
      %637 = vmatpush2.msra.mxu0 0.0
      %638 = vmatprep.subr.mxu0 0.0
      %639 = vmatpush2.msra.mxu0 0.0
      %640 = vmatprep.subr.mxu0 0.0
      %641 = vmatpush2.msra.mxu0 0.0
      %642 = vmatprep.subr.mxu0 0.0
      %643 = vmatpush2.msra.mxu0 0.0
      %644 = vmatprep.subr.mxu0 0.0
      %645 = vmatpush2.msra.mxu0 0.0
      %646 = vmatprep.subr.mxu0 0.0
      %647 = vmatpush2.msra.mxu0 0.0
      %648 = vmatprep.subr.mxu0 0.0
      %649 = vmatpush2.msra.mxu0 0.0
      %650 = vmatprep.subr.mxu0 0.0
      %651 = vmatpush2.msra.mxu0 0.0
      %652 = vmatprep.subr.mxu0 0.0
      %653 = vmatpush2.msra.mxu0 0.0
      %654 = vmatprep.subr.mxu0 0.0
      %655 = vmatpush2.msra.mxu0 0.0
      %656 = vmatprep.subr.mxu0 0.0
      %657 = vmatpush2.msra.mxu0 0.0
      %658 = vmatprep.mubr.f32.mxu0 0.0
      %659 = vmatmul.mubr.f32.gmra.mxu0 %v482
      %v660 = vpop.f32.mrf.mxu0
      %v661 = vadd.f32 %v517, %v660
      %v662 = vpop.f32.mrf.mxu0
      %663 = vmatprep.mubr.f32.mxu0 0.0
      %664 = vmatmul.mubr.f32.gmra.mxu0 %v483
      %v665 = vpop.f32.mrf.mxu0
      %v666 = vadd.f32 %v522, %v665
      %v667 = vpop.f32.mrf.mxu0
      %668 = vmatprep.mubr.f32.mxu0 0.0
      %669 = vmatmul.mubr.f32.gmra.mxu0 %v484
      %v670 = vpop.f32.mrf.mxu0
      %v671 = vadd.f32 %v527, %v670
      %v672 = vpop.f32.mrf.mxu0
      %673 = vmatprep.mubr.f32.mxu0 0.0
      %674 = vmatmul.mubr.f32.gmra.mxu0 %v485
      %v675 = vpop.f32.mrf.mxu0
      %v676 = vadd.f32 %v532, %v675
      %v677 = vpop.f32.mrf.mxu0
      %678 = vmatprep.mubr.f32.mxu0 0.0
      %679 = vmatmul.mubr.f32.gmra.mxu0 %v486
      %v680 = vpop.f32.mrf.mxu0
      %v681 = vadd.f32 %v537, %v680
      %v682 = vpop.f32.mrf.mxu0
      %683 = vmatprep.mubr.f32.mxu0 0.0
      %684 = vmatmul.mubr.f32.gmra.mxu0 %v487
      %v685 = vpop.f32.mrf.mxu0
      %v686 = vadd.f32 %v542, %v685
      %v687 = vpop.f32.mrf.mxu0
      %688 = vmatprep.mubr.f32.mxu0 0.0
      %689 = vmatmul.mubr.f32.gmra.mxu0 %v488
      %v690 = vpop.f32.mrf.mxu0
      %v691 = vadd.f32 %v547, %v690
      %v692 = vpop.f32.mrf.mxu0
      %693 = vmatprep.mubr.f32.mxu0 0.0
      %694 = vmatmul.mubr.f32.gmra.mxu0 %v489
      %v695 = vpop.f32.mrf.mxu0
      %v696 = vadd.f32 %v552, %v695
      %v697 = vpop.f32.mrf.mxu0
      %698 = vmatprep.mubr.f32.mxu0 0.0
      %699 = vmatmul.mubr.f32.gmra.mxu0 %v490
      %v700 = vpop.f32.mrf.mxu0
      %v701 = vadd.f32 %v557, %v700
      %v702 = vpop.f32.mrf.mxu0
      %703 = vmatprep.mubr.f32.mxu0 0.0
      %704 = vmatmul.mubr.f32.gmra.mxu0 %v491
      %v705 = vpop.f32.mrf.mxu0
      %v706 = vadd.f32 %v562, %v705
      %v707 = vpop.f32.mrf.mxu0
      %708 = vmatprep.mubr.f32.mxu0 0.0
      %709 = vmatmul.mubr.f32.gmra.mxu0 %v492
      %v710 = vpop.f32.mrf.mxu0
      %v711 = vadd.f32 %v567, %v710
      %v712 = vpop.f32.mrf.mxu0
      %713 = vmatprep.mubr.f32.mxu0 0.0
      %714 = vmatmul.mubr.f32.gmra.mxu0 %v493
      %v715 = vpop.f32.mrf.mxu0
      %v716 = vadd.f32 %v572, %v715
      %v717 = vpop.f32.mrf.mxu0
      %718 = vmatprep.mubr.f32.mxu0 0.0
      %719 = vmatmul.mubr.f32.gmra.mxu0 %v494
      %v720 = vpop.f32.mrf.mxu0
      %v721 = vadd.f32 %v577, %v720
      %v722 = vpop.f32.mrf.mxu0
      %723 = vmatprep.mubr.f32.mxu0 0.0
      %724 = vmatmul.mubr.f32.gmra.mxu0 %v495
      %v725 = vpop.f32.mrf.mxu0
      %v726 = vadd.f32 %v582, %v725
      %v727 = vpop.f32.mrf.mxu0
      %728 = vmatprep.mubr.f32.mxu0 0.0
      %729 = vmatmul.mubr.f32.gmra.mxu0 %v496
      %v730 = vpop.f32.mrf.mxu0
      %v731 = vadd.f32 %v587, %v730
      %v732 = vpop.f32.mrf.mxu0
      %733 = vmatprep.mubr.f32.mxu0 0.0
      %734 = vmatmul.mubr.f32.gmra.mxu0 %v497
      %v735 = vpop.f32.mrf.mxu0
      %v736 = vadd.f32 %v592, %v735
      %v737 = vpop.f32.mrf.mxu0
      %738 = vdwg.mxu0
      %v739 = vtanh.pop %v661
      %v740 = vtanh.pop %v666
      %v741 = vtanh.pop %v671
      %v742 = vtanh.pop %v676
      %v743 = vtanh.pop %v681
      %v744 = vtanh.pop %v686
      %v745 = vtanh.pop %v691
      %v746 = vtanh.pop %v696
      %v747 = vtanh.pop %v701
      %v748 = vtanh.pop %v706
      %v749 = vtanh.pop %v711
      %v750 = vtanh.pop %v716
      %v751 = vtanh.pop %v721
      %v752 = vtanh.pop %v726
      %v753 = vtanh.pop %v731
      %v754 = vtanh.pop %v736
      %755 = vst [vmem:[#allocation2] sm:$0xff] %v739
      %756 = vst [vmem:[#allocation2 + $0x8] sm:$0xff] %v740
      %757 = vst [vmem:[#allocation2 + $0x10] sm:$0xff] %v741
      %758 = vst [vmem:[#allocation2 + $0x18] sm:$0xff] %v742
      %759 = vst [vmem:[#allocation2 + $0x20] sm:$0xff] %v743
      %760 = vst [vmem:[#allocation2 + $0x28] sm:$0xff] %v744
      %761 = vst [vmem:[#allocation2 + $0x30] sm:$0xff] %v745
      %762 = vst [vmem:[#allocation2 + $0x38] sm:$0xff] %v746
      %763 = vst [vmem:[#allocation2 + $0x40] sm:$0xff] %v747
      %764 = vst [vmem:[#allocation2 + $0x48] sm:$0xff] %v748
      %765 = vst [vmem:[#allocation2 + $0x50] sm:$0xff] %v749
      %766 = vst [vmem:[#allocation2 + $0x58] sm:$0xff] %v750
      %767 = vst [vmem:[#allocation2 + $0x60] sm:$0xff] %v751
      %768 = vst [vmem:[#allocation2 + $0x68] sm:$0xff] %v752
      %769 = vst [vmem:[#allocation2 + $0x70] sm:$0xff] %v753
      %770 = vst [vmem:[#allocation2 + $0x78] sm:$0xff] %v754
    $region49: #{tpu_custom_call.1} parent=1 // pred_fallthru
      _
    %v771 = vld [vmem:[#allocation2] sm:$0xff]
    %v772 = vld [vmem:[#allocation2 + $0x8] sm:$0xff]
    %v773 = vld [vmem:[#allocation2 + $0x10] sm:$0xff]
    %v774 = vld [vmem:[#allocation2 + $0x18] sm:$0xff]
    %v775 = vld [vmem:[#allocation2 + $0x20] sm:$0xff]
    %v776 = vld [vmem:[#allocation2 + $0x28] sm:$0xff]
    %v777 = vld [vmem:[#allocation2 + $0x30] sm:$0xff]
    %v778 = vld [vmem:[#allocation2 + $0x38] sm:$0xff]
    %v779 = vld [vmem:[#allocation2 + $0x40] sm:$0xff]
    %v780 = vld [vmem:[#allocation2 + $0x48] sm:$0xff]
    %v781 = vld [vmem:[#allocation2 + $0x50] sm:$0xff]
    %v782 = vld [vmem:[#allocation2 + $0x58] sm:$0xff]
    %v783 = vld [vmem:[#allocation2 + $0x60] sm:$0xff]
    %v784 = vld [vmem:[#allocation2 + $0x68] sm:$0xff]
    %v785 = vld [vmem:[#allocation2 + $0x70] sm:$0xff]
    %v786 = vld [vmem:[#allocation2 + $0x78] sm:$0xff]
    %v787 = vld [vmem:[#allocation3] sm:$0xff]
    %v788 = vld [vmem:[#allocation3 + $0x8] sm:$0xff]
    %v789 = vld [vmem:[#allocation3 + $0x10] sm:$0xff]
    %v790 = vld [vmem:[#allocation3 + $0x18] sm:$0xff]
    %v791 = vld [vmem:[#allocation3 + $0x20] sm:$0xff]
    %v792 = vld [vmem:[#allocation3 + $0x28] sm:$0xff]
    %v793 = vld [vmem:[#allocation3 + $0x30] sm:$0xff]
    %v794 = vld [vmem:[#allocation3 + $0x38] sm:$0xff]
    %v795 = vld [vmem:[#allocation3 + $0x40] sm:$0xff]
    %v796 = vld [vmem:[#allocation3 + $0x48] sm:$0xff]
    %v797 = vld [vmem:[#allocation3 + $0x50] sm:$0xff]
    %v798 = vld [vmem:[#allocation3 + $0x58] sm:$0xff]
    %v799 = vld [vmem:[#allocation3 + $0x60] sm:$0xff]
    %v800 = vld [vmem:[#allocation3 + $0x68] sm:$0xff]
    %v801 = vld [vmem:[#allocation3 + $0x70] sm:$0xff]
    %v802 = vld [vmem:[#allocation3 + $0x78] sm:$0xff]
    %803 = vmatprep.subr.mxu0 0.0
    %804 = vmatpush1.msra.mxu0 %v802
    %805 = vmatprep.subr.mxu0 0.0
    %806 = vmatpush1.msra.mxu0 %v801
    %807 = vmatprep.subr.mxu0 0.0
    %808 = vmatpush1.msra.mxu0 %v800
    %809 = vmatprep.subr.mxu0 0.0
    %810 = vmatpush1.msra.mxu0 %v799
    %811 = vmatprep.subr.mxu0 0.0
    %812 = vmatpush1.msra.mxu0 %v798
    %813 = vmatprep.subr.mxu0 0.0
    %814 = vmatpush1.msra.mxu0 %v797
    %815 = vmatprep.subr.mxu0 0.0
    %816 = vmatpush1.msra.mxu0 %v796
    %817 = vmatprep.subr.mxu0 0.0
    %818 = vmatpush1.msra.mxu0 %v795
    %819 = vmatprep.subr.mxu0 0.0
    %820 = vmatpush1.msra.mxu0 %v794
    %821 = vmatprep.subr.mxu0 0.0
    %822 = vmatpush1.msra.mxu0 %v793
    %823 = vmatprep.subr.mxu0 0.0
    %824 = vmatpush1.msra.mxu0 %v792
    %825 = vmatprep.subr.mxu0 0.0
    %826 = vmatpush1.msra.mxu0 %v791
    %827 = vmatprep.subr.mxu0 0.0
    %828 = vmatpush1.msra.mxu0 %v790
    %829 = vmatprep.subr.mxu0 0.0
    %830 = vmatpush1.msra.mxu0 %v789
    %831 = vmatprep.subr.mxu0 0.0
    %832 = vmatpush1.msra.mxu0 %v788
    %833 = vmatprep.subr.mxu0 0.0
    %834 = vmatpush1.msra.mxu0 %v787
    %835 = vmatprep.subr.mxu0 0.0
    %836 = vmatpush2.msra.mxu0 0.0
    %837 = vmatprep.subr.mxu0 0.0
    %838 = vmatpush2.msra.mxu0 0.0
    %839 = vmatprep.subr.mxu0 0.0
    %840 = vmatpush2.msra.mxu0 0.0
    %841 = vmatprep.subr.mxu0 0.0
    %842 = vmatpush2.msra.mxu0 0.0
    %843 = vmatprep.subr.mxu0 0.0
    %844 = vmatpush2.msra.mxu0 0.0
    %845 = vmatprep.subr.mxu0 0.0
    %846 = vmatpush2.msra.mxu0 0.0
    %847 = vmatprep.subr.mxu0 0.0
    %848 = vmatpush2.msra.mxu0 0.0
    %849 = vmatprep.subr.mxu0 0.0
    %850 = vmatpush2.msra.mxu0 0.0
    %851 = vmatprep.subr.mxu0 0.0
    %852 = vmatpush2.msra.mxu0 0.0
    %853 = vmatprep.subr.mxu0 0.0
    %854 = vmatpush2.msra.mxu0 0.0
    %855 = vmatprep.subr.mxu0 0.0
    %856 = vmatpush2.msra.mxu0 0.0
    %857 = vmatprep.subr.mxu0 0.0
    %858 = vmatpush2.msra.mxu0 0.0
    %859 = vmatprep.subr.mxu0 0.0
    %860 = vmatpush2.msra.mxu0 0.0
    %861 = vmatprep.subr.mxu0 0.0
    %862 = vmatpush2.msra.mxu0 0.0
    %863 = vmatprep.subr.mxu0 0.0
    %864 = vmatpush2.msra.mxu0 0.0
    %865 = vmatprep.subr.mxu0 0.0
    %866 = vmatpush2.msra.mxu0 0.0
    %867 = vmatprep.mubr.f32.mxu0 0.0
    %868 = vmatmul.mubr.f32.gmra.mxu0 %v771
    %v869 = vpop.f32.mrf.mxu0
    %v870 = vadd.f32 0.0, %v869
    %v871 = vpop.f32.mrf.mxu0
    %872 = vmatprep.mubr.f32.mxu0 0.0
    %873 = vmatmul.mubr.f32.gmra.mxu0 %v772
    %v874 = vpop.f32.mrf.mxu0
    %v875 = vadd.f32 0.0, %v874
    %v876 = vpop.f32.mrf.mxu0
    %877 = vmatprep.mubr.f32.mxu0 0.0
    %878 = vmatmul.mubr.f32.gmra.mxu0 %v773
    %v879 = vpop.f32.mrf.mxu0
    %v880 = vadd.f32 0.0, %v879
    %v881 = vpop.f32.mrf.mxu0
    %882 = vmatprep.mubr.f32.mxu0 0.0
    %883 = vmatmul.mubr.f32.gmra.mxu0 %v774
    %v884 = vpop.f32.mrf.mxu0
    %v885 = vadd.f32 0.0, %v884
    %v886 = vpop.f32.mrf.mxu0
    %887 = vmatprep.mubr.f32.mxu0 0.0
    %888 = vmatmul.mubr.f32.gmra.mxu0 %v775
    %v889 = vpop.f32.mrf.mxu0
    %v890 = vadd.f32 0.0, %v889
    %v891 = vpop.f32.mrf.mxu0
    %892 = vmatprep.mubr.f32.mxu0 0.0
    %893 = vmatmul.mubr.f32.gmra.mxu0 %v776
    %v894 = vpop.f32.mrf.mxu0
    %v895 = vadd.f32 0.0, %v894
    %v896 = vpop.f32.mrf.mxu0
    %897 = vmatprep.mubr.f32.mxu0 0.0
    %898 = vmatmul.mubr.f32.gmra.mxu0 %v777
    %v899 = vpop.f32.mrf.mxu0
    %v900 = vadd.f32 0.0, %v899
    %v901 = vpop.f32.mrf.mxu0
    %902 = vmatprep.mubr.f32.mxu0 0.0
    %903 = vmatmul.mubr.f32.gmra.mxu0 %v778
    %v904 = vpop.f32.mrf.mxu0
    %v905 = vadd.f32 0.0, %v904
    %v906 = vpop.f32.mrf.mxu0
    %907 = vmatprep.mubr.f32.mxu0 0.0
    %908 = vmatmul.mubr.f32.gmra.mxu0 %v779
    %v909 = vpop.f32.mrf.mxu0
    %v910 = vadd.f32 0.0, %v909
    %v911 = vpop.f32.mrf.mxu0
    %912 = vmatprep.mubr.f32.mxu0 0.0
    %913 = vmatmul.mubr.f32.gmra.mxu0 %v780
    %v914 = vpop.f32.mrf.mxu0
    %v915 = vadd.f32 0.0, %v914
    %v916 = vpop.f32.mrf.mxu0
    %917 = vmatprep.mubr.f32.mxu0 0.0
    %918 = vmatmul.mubr.f32.gmra.mxu0 %v781
    %v919 = vpop.f32.mrf.mxu0
    %v920 = vadd.f32 0.0, %v919
    %v921 = vpop.f32.mrf.mxu0
    %922 = vmatprep.mubr.f32.mxu0 0.0
    %923 = vmatmul.mubr.f32.gmra.mxu0 %v782
    %v924 = vpop.f32.mrf.mxu0
    %v925 = vadd.f32 0.0, %v924
    %v926 = vpop.f32.mrf.mxu0
    %927 = vmatprep.mubr.f32.mxu0 0.0
    %928 = vmatmul.mubr.f32.gmra.mxu0 %v783
    %v929 = vpop.f32.mrf.mxu0
    %v930 = vadd.f32 0.0, %v929
    %v931 = vpop.f32.mrf.mxu0
    %932 = vmatprep.mubr.f32.mxu0 0.0
    %933 = vmatmul.mubr.f32.gmra.mxu0 %v784
    %v934 = vpop.f32.mrf.mxu0
    %v935 = vadd.f32 0.0, %v934
    %v936 = vpop.f32.mrf.mxu0
    %937 = vmatprep.mubr.f32.mxu0 0.0
    %938 = vmatmul.mubr.f32.gmra.mxu0 %v785
    %v939 = vpop.f32.mrf.mxu0
    %v940 = vadd.f32 0.0, %v939
    %v941 = vpop.f32.mrf.mxu0
    %942 = vmatprep.mubr.f32.mxu0 0.0
    %943 = vmatmul.mubr.f32.gmra.mxu0 %v786
    %v944 = vpop.f32.mrf.mxu0
    %v945 = vadd.f32 0.0, %v944
    %v946 = vpop.f32.mrf.mxu0
    %947 = vdwg.mxu0
    %v948 = vld [vmem:[#allocation6] sm:$0xff]
    %v949 = vld [vmem:[#allocation6 + $0x8] sm:$0xff]
    %v950 = vld [vmem:[#allocation6 + $0x10] sm:$0xff]
    %v951 = vld [vmem:[#allocation6 + $0x18] sm:$0xff]
    %v952 = vld [vmem:[#allocation6 + $0x20] sm:$0xff]
    %v953 = vld [vmem:[#allocation6 + $0x28] sm:$0xff]
    %v954 = vld [vmem:[#allocation6 + $0x30] sm:$0xff]
    %v955 = vld [vmem:[#allocation6 + $0x38] sm:$0xff]
    %v956 = vld [vmem:[#allocation6 + $0x40] sm:$0xff]
    %v957 = vld [vmem:[#allocation6 + $0x48] sm:$0xff]
    %v958 = vld [vmem:[#allocation6 + $0x50] sm:$0xff]
    %v959 = vld [vmem:[#allocation6 + $0x58] sm:$0xff]
    %v960 = vld [vmem:[#allocation6 + $0x60] sm:$0xff]
    %v961 = vld [vmem:[#allocation6 + $0x68] sm:$0xff]
    %v962 = vld [vmem:[#allocation6 + $0x70] sm:$0xff]
    %v963 = vld [vmem:[#allocation6 + $0x78] sm:$0xff]
    %v964 = vmul.f32 %v870, %v948
    %v965 = vmul.f32 %v875, %v949
    %v966 = vmul.f32 %v880, %v950
    %v967 = vmul.f32 %v885, %v951
    %v968 = vmul.f32 %v890, %v952
    %v969 = vmul.f32 %v895, %v953
    %v970 = vmul.f32 %v900, %v954
    %v971 = vmul.f32 %v905, %v955
    %v972 = vmul.f32 %v910, %v956
    %v973 = vmul.f32 %v915, %v957
    %v974 = vmul.f32 %v920, %v958
    %v975 = vmul.f32 %v925, %v959
    %v976 = vmul.f32 %v930, %v960
    %v977 = vmul.f32 %v935, %v961
    %v978 = vmul.f32 %v940, %v962
    %v979 = vmul.f32 %v945, %v963
    %v980 = vadd.f32 %v964, %v965
    %v981 = vadd.f32 %v980, %v966
    %v982 = vadd.f32 %v981, %v967
    %v983 = vadd.f32 %v982, %v968
    %v984 = vadd.f32 %v983, %v969
    %v985 = vadd.f32 %v984, %v970
    %v986 = vadd.f32 %v985, %v971
    %v987 = vadd.f32 %v986, %v972
    %v988 = vadd.f32 %v987, %v973
    %v989 = vadd.f32 %v988, %v974
    %v990 = vadd.f32 %v989, %v975
    %v991 = vadd.f32 %v990, %v976
    %v992 = vadd.f32 %v991, %v977
    %v993 = vadd.f32 %v992, %v978
    %v994 = vadd.f32 %v993, %v979
    %v995 = vrot.slane %v994, 4
    %v996 = vadd.f32 %v994, %v995
    %v997 = vrot.slane %v996, 2
    %v998 = vadd.f32 %v996, %v997
    %v999 = vrot.slane %v998, 1
    %v1000 = vadd.f32 %v998, %v999
    %v1001 = vld [vmem:[%s8] sm:$0x1]
    %v1002 = vadd.f32 %v1000, %v1001
    %1003 = vst [vmem:[#allocation8] sm:$0x1] %v1002
    // Predicated region
    $region50: #{tpu_custom_call.1} parent=1 // pred_check
      _
    $region51: #{tpu_custom_call.1} parent=1 // pred_check_branch
      %1005 = sbr.rel (0) target = $region53
    $region52: #{tpu_custom_call.1} parent=1 // pred_region
      %s1007 = ssub.s32 16, 16
      %1008 = vsyncadd [#allocation5], %s1007
      %s1010 = sshll.u32 [#allocation8], 4
      %s1011 = int_to_ptr.vmem [resolvable:$true] %s1010
      %1013 = dma.vmem_to_hbm [thread:$0]  %s1011, 16, %s9, [#allocation5]
    $region53: #{tpu_custom_call.1} parent=1 // pred_fallthru
      _
    // Predicated region
    $region54: #{tpu_custom_call.1} parent=1 // pred_check
      _
    $region55: #{tpu_custom_call.1} parent=1 // pred_check_branch
      %1015 = sbr.rel (0) target = $region57
    $region56: #{tpu_custom_call.1} parent=1 // pred_region
      %1016 = dma.done [#allocation5], 16
    $region57: #{tpu_custom_call.1} parent=1 // pred_fallthru
      _
    %1017 = vsyncpa [#allocation4], 1
    %1018 = vsyncpa [#allocation7], 1
    %1019 = vsyncpa [#allocation5], 1

</llo_original>
